<compile_context>
chip_gen: v5e
topology: v5e:2x2
jax: 0.10.0
libtpu: 0.0.40
codegen_flags: <defaults>
</compile_context>

<pallas_src>
import jax
import jax.numpy as jnp
from jax.experimental import pallas as pl
from jax.experimental.pallas import tpu as pltpu


def _make_kernel(M, tile_n, tiles_per_slice):
    n_slabs = tile_n // 128

    def kernel(eps2_ref, x_ref, wrow_ref, out_w_ref, out_c_ref, sum_sc, cnt_sc):
        p = pl.program_id(0)          # slice (parallel) axis
        i = pl.program_id(1)          # lane-tile (reduction) axis

        @pl.when(i == 0)
        def _init():
            sum_sc[...] = jnp.zeros_like(sum_sc)
            cnt_sc[...] = jnp.zeros_like(cnt_sc)

        eps2 = eps2_ref[0]                                 # scalar from SMEM
        R, tn = x_ref.shape
        x = x_ref[...].astype(jnp.float32)                 # (R, tile_n)

        # Global column index of each lane; mask out-of-range (ragged / clamped
        # duplicate) columns instead of padding x in HBM.
        col0 = (p * tiles_per_slice + i) * tile_n
        col = col0 + jax.lax.broadcasted_iota(jnp.int32, (R, tn), 1)
        in_bounds = col < M
        valid = jnp.logical_and(in_bounds, jnp.logical_not(jnp.isnan(x)))

        val = jnp.where(valid, jnp.sqrt(eps2 + x * x), jnp.float32(0.0))
        cnt = valid.astype(jnp.int32)

        # Fold tile_n -> 128 lanes with plain VPU adds (no per-iter XLU reduce).
        acc_v = sum_sc[...]
        acc_c = cnt_sc[...]
        for j in range(n_slabs):
            sl = slice(j * 128, (j + 1) * 128)
            acc_v = acc_v + val[:, sl]
            acc_c = acc_c + cnt[:, sl]
        sum_sc[...] = acc_v
        cnt_sc[...] = acc_c

        @pl.when(i == pl.num_programs(1) - 1)
        def _finalize():
            # Row r = b*C + c carries weight w[c]; wrow_ref is w tiled B times.
            weighted = jnp.sum(sum_sc[...] * wrow_ref[...])        # scalar f32
            n_valid = jnp.sum(cnt_sc[...])                         # scalar i32
            out_w_ref[...] = jnp.full(out_w_ref.shape, weighted, jnp.float32)
            out_c_ref[...] = jnp.full(out_c_ref.shape, n_valid, jnp.int32)

    return kernel


def weighted_l1_norm(x, w, eps, *, tile_n=2048, vmem_budget_bytes=24 * 1024 * 1024):
    """x: (B, C, H, W) NCHW float tensor, w: (C,), eps: scalar. Returns scalar f32."""
    B, C, H, W = x.shape
    R = B * C
    M = H * W

    if not jnp.issubdtype(x.dtype, jnp.floating):
        x = x.astype(jnp.float32)
    # Contiguous NCHW -> (B*C, H*W): a free view, no extra HBM pass.
    x2d = x.reshape(R, M)
    itemsize = jnp.dtype(x2d.dtype).itemsize

    # --- pick lane tile width: big, multiple of 128, within VMEM budget ---
    m_pad = ((M + 127) // 128) * 128
    scratch_bytes = R * 128 * (4 + 4) + R * 4            # f32 sums + i32 counts + w rows
    avail = max(vmem_budget_bytes - scratch_bytes, 2 * R * 128 * itemsize)
    max_tn = max(128, (avail // (2 * R * itemsize)) // 128 * 128)
    tn = int(max(128, min(tile_n, m_pad, max_tn)))

    total_tiles = pl.cdiv(M, tn)
    num_slices = 2 if total_tiles >= 2 else 1            # feeds both TCs on v7x
    tiles_per_slice = pl.cdiv(total_tiles, num_slices)

    # Per-row weights: row r = b*C + c -> w[c].
    w_rows = jnp.tile(jnp.asarray(w, jnp.float32).reshape(-1), B).reshape(R, 1)
    eps2 = (jnp.asarray(eps, jnp.float32) ** 2).reshape(1)

    kernel = _make_kernel(M, tn, tiles_per_slice)
    grid = (num_slices, tiles_per_slice)

    # Clamp the block index; out-of-range tiles re-read the last block and are
    # fully masked in-kernel (zero contribution).
    def x_map(p, i):
        return (0, jnp.minimum(p * tiles_per_slice + i, total_tiles - 1))

    out_w, out_c = pl.pallas_call(
        kernel,
        out_shape=(
            jax.ShapeDtypeStruct((num_slices, 1, 128), jnp.float32),
            jax.ShapeDtypeStruct((num_slices, 1, 128), jnp.int32),
        ),
        grid_spec=pltpu.PrefetchScalarGridSpec(
            num_scalar_prefetch=0,
            grid=grid,
            in_specs=[
                pl.BlockSpec(memory_space=pltpu.MemorySpace.SMEM),   # eps^2 (1,)
                pl.BlockSpec((R, tn), x_map),                        # x lane tile
                pl.BlockSpec((R, 1), lambda p, i: (0, 0)),           # per-row weights
            ],
            out_specs=[
                pl.BlockSpec((1, 1, 128), lambda p, i: (p, 0, 0)),   # weighted partial
                pl.BlockSpec((1, 1, 128), lambda p, i: (p, 0, 0)),   # valid-count partial
            ],
            scratch_shapes=[
                pltpu.VMEM((R, 128), jnp.float32),   # lane-wide per-row sums
                pltpu.VMEM((R, 128), jnp.int32),     # lane-wide per-row non-NaN counts
            ],
        ),
        compiler_params=pltpu.CompilerParams(
            dimension_semantics=("parallel", "arbitrary"),
            vmem_limit_bytes=32 * 1024 * 1024,
        ),
    )(eps2, x2d, w_rows)

    # Tiny epilogue combining the (<=2) per-slice partials.
    weighted = jnp.sum(out_w[:, 0, 0])
    n_valid = jnp.sum(out_c[:, 0, 0]).astype(jnp.float32)
    return weighted / (n_valid / jnp.float32(C))


def weighted_l1_norm_ref(x, w, eps):
    """Plain-JAX reference mirroring the PyTorch forward exactly."""
    x = x.astype(jnp.float32)
    val = jnp.sqrt(jnp.asarray(eps, jnp.float32) ** 2 + x ** 2)
    val = jnp.where(jnp.isnan(x), 0.0, val)       # nansum over dims 3, 2, 0
    per_c = jnp.sum(val, axis=(3, 2, 0))
    loss = jnp.sum(per_c * jnp.asarray(w, jnp.float32))
    n_valid = jnp.sum(~jnp.isnan(x)).astype(jnp.float32)
    return loss / (n_valid / x.shape[1])


if __name__ == "__main__":
    key = jax.random.PRNGKey(0)
    kx, kw, kx2, kw2 = jax.random.split(key, 4)

    # Primary test: the module's nominal small shape.
    B, C, H, W = 2, 4, 16, 16
    x = jax.random.normal(kx, (B, C, H, W), dtype=jnp.float32)
    x = x.at[0, 1, 3, 5].set(jnp.nan)
    x = x.at[1, 2, 7, 9].set(jnp.nan)
    x = x.at[1, 0, 0, 0].set(jnp.nan)
    w = jax.random.uniform(kw, (C,), dtype=jnp.float32, minval=0.5, maxval=1.5)
    eps = jnp.float32(1e-3)

    out = jax.block_until_ready(weighted_l1_norm(x, w, eps))
    ref = weighted_l1_norm_ref(x, w, eps)
    assert jnp.allclose(out, ref, rtol=1e-5, atol=1e-5), (out, ref)

    # Secondary test: ragged lane tiles, 2-slice parallel split, rows not a
    # multiple of 8 (B*C = 15), forced small tile_n to exercise the grid paths.
    B2, C2, H2, W2 = 3, 5, 12, 20
    x2 = jax.random.normal(kx2, (B2, C2, H2, W2), dtype=jnp.float32)
    x2 = x2.at[2, 3, 11, 19].set(jnp.nan)
    x2 = x2.at[0, 0, 5, 1].set(jnp.nan)
    w2 = jax.random.uniform(kw2, (C2,), dtype=jnp.float32, minval=0.5, maxval=1.5)

    out2 = jax.block_until_ready(weighted_l1_norm(x2, w2, eps, tile_n=128))
    ref2 = weighted_l1_norm_ref(x2, w2, eps)
    assert jnp.allclose(out2, ref2, rtol=1e-5, atol=1e-5), (out2, ref2)

    print("KERNEL_OK")
</pallas_src>

<mosaic_0001>
module attributes {stable_mosaic.version = 11 : i64} {
  func.func @kernel(%arg0: i32, %arg1: i32, %arg2: memref<1xf32, #tpu.memory_space<smem>>, %arg3: memref<8x256xf32, #tpu.memory_space<vmem>>, %arg4: memref<8x1xf32, #tpu.memory_space<vmem>>, %arg5: memref<1x1x128xf32, #tpu.memory_space<vmem>>, %arg6: memref<1x1x128xi32, #tpu.memory_space<vmem>>, %arg7: memref<8x128xf32, #tpu.memory_space<vmem>>, %arg8: memref<8x128xi32, #tpu.memory_space<vmem>>) attributes {dimension_semantics = [#tpu.dimension_semantics<parallel>, #tpu.dimension_semantics<arbitrary>], iteration_bounds = array<i64: 1, 1>, scalar_prefetch = 0 : i64, scratch_operands = 2 : i64, tpu.core_type = #tpu.core_type<tc>, window_params = [{transform_indices = @transform_0, window_bounds = array<i64: 1>}, {transform_indices = @transform_1, window_bounds = array<i64: 8, 256>}, {pipeline_mode = #tpu.pipeline_mode<synchronous>, transform_indices = @transform_2, window_bounds = array<i64: 8, 1>}, {transform_indices = @transform_3, window_bounds = array<i64: 1, 1, 128>}, {transform_indices = @transform_4, window_bounds = array<i64: 1, 1, 128>}]} {
    %c0_i32 = arith.constant 0 : i32
    %0 = arith.cmpi eq, %arg1, %c0_i32 : i32
    %1 = arith.extui %0 : i1 to i32
    %c0_i32_0 = arith.constant 0 : i32
    %2 = arith.cmpi ne, %1, %c0_i32_0 : i32
    scf.if %2 {
      %cst_15 = arith.constant 0.000000e+00 : f32
      %38 = vector.broadcast %cst_15 : f32 to vector<8x128xf32>
      %c0_16 = arith.constant 0 : index
      %c0_17 = arith.constant 0 : index
      %39 = vector.load %arg7[%c0_16, %c0_17] : memref<8x128xf32, #tpu.memory_space<vmem>>, vector<8x128xf32>
      tpu.vector_store %arg7[%c0_16, %c0_17], %38 {strides = array<i32>} : memref<8x128xf32, #tpu.memory_space<vmem>>, vector<8x128xf32>,
      %c0_i32_18 = arith.constant 0 : i32
      %40 = vector.broadcast %c0_i32_18 : i32 to vector<8x128xi32>
      %c0_19 = arith.constant 0 : index
      %c0_20 = arith.constant 0 : index
      %41 = vector.load %arg8[%c0_19, %c0_20] : memref<8x128xi32, #tpu.memory_space<vmem>>, vector<8x128xi32>
      tpu.vector_store %arg8[%c0_19, %c0_20], %40 {strides = array<i32>} : memref<8x128xi32, #tpu.memory_space<vmem>>, vector<8x128xi32>,
    } else {
    }
    %c0 = arith.constant 0 : index
    %3 = memref.load %arg2[%c0] : memref<1xf32, #tpu.memory_space<smem>>
    %c0_1 = arith.constant 0 : index
    %c0_2 = arith.constant 0 : index
    %4 = vector.load %arg3[%c0_1, %c0_2] : memref<8x256xf32, #tpu.memory_space<vmem>>, vector<8x256xf32>
    %c1_i32 = arith.constant 1 : i32
    %5 = arith.muli %arg0, %c1_i32 : i32
    %6 = arith.addi %5, %arg1 : i32
    %c256_i32 = arith.constant 256 : i32
    %7 = arith.muli %6, %c256_i32 : i32
    %8 = tpu.iota {dimensions = array<i32: 1>} : vector<8x256xi32>
    %9 = vector.broadcast %7 : i32 to vector<8x256xi32>
    %10 = arith.addi %9, %8 : vector<8x256xi32>
    %c256_i32_3 = arith.constant 256 : i32
    %11 = vector.broadcast %c256_i32_3 : i32 to vector<8x256xi32>
    %12 = arith.cmpi slt, %10, %11 : vector<8x256xi32>
    %13 = arith.cmpf one, %4, %4 : vector<8x256xf32>
    %cst = arith.constant dense<true> : vector<8x256xi1>
    %14 = arith.xori %13, %cst : vector<8x256xi1>
    %15 = arith.andi %12, %14 : vector<8x256xi1>
    %16 = arith.mulf %4, %4 : vector<8x256xf32>
    %17 = vector.broadcast %3 : f32 to vector<8x256xf32>
    %18 = arith.addf %17, %16 : vector<8x256xf32>
    %19 = math.sqrt %18 : vector<8x256xf32>
    %cst_4 = arith.constant 0.000000e+00 : f32
    %20 = vector.broadcast %cst_4 : f32 to vector<8x256xf32>
    %21 = arith.select %15, %19, %20 : vector<8x256xi1>, vector<8x256xf32>
    %22 = arith.extui %15 : vector<8x256xi1> to vector<8x256xi32>
    %c0_5 = arith.constant 0 : index
    %c0_6 = arith.constant 0 : index
    %23 = vector.load %arg7[%c0_5, %c0_6] : memref<8x128xf32, #tpu.memory_space<vmem>>, vector<8x128xf32>
    %c0_7 = arith.constant 0 : index
    %c0_8 = arith.constant 0 : index
    %24 = vector.load %arg8[%c0_7, %c0_8] : memref<8x128xi32, #tpu.memory_space<vmem>>, vector<8x128xi32>
    %25 = vector.extract_strided_slice %21 {offsets = [0, 0], sizes = [8, 128], strides = [1, 1]} : vector<8x256xf32> to vector<8x128xf32>
    %26 = arith.addf %23, %25 : vector<8x128xf32>
    %27 = vector.extract_strided_slice %22 {offsets = [0, 0], sizes = [8, 128], strides = [1, 1]} : vector<8x256xi32> to vector<8x128xi32>
    %28 = arith.addi %24, %27 : vector<8x128xi32>
    %29 = vector.extract_strided_slice %21 {offsets = [0, 128], sizes = [8, 128], strides = [1, 1]} : vector<8x256xf32> to vector<8x128xf32>
    %30 = arith.addf %26, %29 : vector<8x128xf32>
    %31 = vector.extract_strided_slice %22 {offsets = [0, 128], sizes = [8, 128], strides = [1, 1]} : vector<8x256xi32> to vector<8x128xi32>
    %32 = arith.addi %28, %31 : vector<8x128xi32>
    %c0_9 = arith.constant 0 : index
    %c0_10 = arith.constant 0 : index
    %33 = vector.load %arg7[%c0_9, %c0_10] : memref<8x128xf32, #tpu.memory_space<vmem>>, vector<8x128xf32>
    tpu.vector_store %arg7[%c0_9, %c0_10], %30 {strides = array<i32>} : memref<8x128xf32, #tpu.memory_space<vmem>>, vector<8x128xf32>,
    %c0_11 = arith.constant 0 : index
    %c0_12 = arith.constant 0 : index
    %34 = vector.load %arg8[%c0_11, %c0_12] : memref<8x128xi32, #tpu.memory_space<vmem>>, vector<8x128xi32>
    tpu.vector_store %arg8[%c0_11, %c0_12], %32 {strides = array<i32>} : memref<8x128xi32, #tpu.memory_space<vmem>>, vector<8x128xi32>,
    %c0_i32_13 = arith.constant 0 : i32
    %35 = arith.cmpi eq, %arg1, %c0_i32_13 : i32
    %36 = arith.extui %35 : i1 to i32
    %c0_i32_14 = arith.constant 0 : i32
    %37 = arith.cmpi ne, %36, %c0_i32_14 : i32
    scf.if %37 {
      %c0_15 = arith.constant 0 : index
      %c0_16 = arith.constant 0 : index
      %38 = vector.load %arg7[%c0_15, %c0_16] : memref<8x128xf32, #tpu.memory_space<vmem>>, vector<8x128xf32>
      %c0_17 = arith.constant 0 : index
      %c0_18 = arith.constant 0 : index
      %39 = vector.load %arg4[%c0_17, %c0_18] : memref<8x1xf32, #tpu.memory_space<vmem>>, vector<8x1xf32>
      %40 = vector.broadcast %39 : vector<8x1xf32> to vector<8x128xf32>
      %41 = arith.mulf %38, %40 : vector<8x128xf32>
      %42 = vector.shape_cast %41 : vector<8x128xf32> to vector<1x8x128xf32>
      %cst_19 = arith.constant dense<0.000000e+00> : vector<1xf32>
      %43 = vector.multi_reduction <add>, %42, %cst_19 [1, 2] : vector<1x8x128xf32> to vector<1xf32>
      %44 = vector.shape_cast %43 : vector<1xf32> to vector<1x1x1xf32>
      %45 = vector.extract %44[0, 0, 0] : f32 from vector<1x1x1xf32>
      %c0_20 = arith.constant 0 : index
      %c0_21 = arith.constant 0 : index
      %46 = vector.load %arg8[%c0_20, %c0_21] : memref<8x128xi32, #tpu.memory_space<vmem>>, vector<8x128xi32>
      %47 = vector.shape_cast %46 : vector<8x128xi32> to vector<1x8x128xi32>
      %cst_22 = arith.constant dense<0> : vector<1xi32>
      %48 = vector.multi_reduction <add>, %47, %cst_22 [1, 2] : vector<1x8x128xi32> to vector<1xi32>
      %49 = vector.shape_cast %48 : vector<1xi32> to vector<1x1x1xi32>
      %50 = vector.extract %49[0, 0, 0] : i32 from vector<1x1x1xi32>
      %51 = vector.broadcast %45 : f32 to vector<1x1x128xf32>
      %c0_23 = arith.constant 0 : index
      %c0_24 = arith.constant 0 : index
      %c0_25 = arith.constant 0 : index
      %52 = vector.load %arg5[%c0_23, %c0_24, %c0_25] : memref<1x1x128xf32, #tpu.memory_space<vmem>>, vector<1x1x128xf32>
      tpu.vector_store %arg5[%c0_23, %c0_24, %c0_25], %51 {strides = array<i32>} : memref<1x1x128xf32, #tpu.memory_space<vmem>>, vector<1x1x128xf32>,
      %53 = vector.broadcast %50 : i32 to vector<1x1x128xi32>
      %c0_26 = arith.constant 0 : index
      %c0_27 = arith.constant 0 : index
      %c0_28 = arith.constant 0 : index
      %54 = vector.load %arg6[%c0_26, %c0_27, %c0_28] : memref<1x1x128xi32, #tpu.memory_space<vmem>>, vector<1x1x128xi32>
      tpu.vector_store %arg6[%c0_26, %c0_27, %c0_28], %53 {strides = array<i32>} : memref<1x1x128xi32, #tpu.memory_space<vmem>>, vector<1x1x128xi32>,
    } else {
    }
    return
  }
  func.func @transform_0(%arg0: i32, %arg1: i32) -> i32 {
    %c0_i32 = arith.constant 0 : i32
    %c0_i32_0 = arith.constant 0 : i32
    return %c0_i32 : i32
  }
  func.func @transform_1(%arg0: i32, %arg1: i32) -> (i32, i32) {
    %c1_i32 = arith.constant 1 : i32
    %0 = arith.muli %arg0, %c1_i32 : i32
    %1 = arith.addi %0, %arg1 : i32
    %c0_i32 = arith.constant 0 : i32
    %2 = arith.minsi %1, %c0_i32 : i32
    %c0_i32_0 = arith.constant 0 : i32
    %c0_i32_1 = arith.constant 0 : i32
    return %c0_i32_0, %2 : i32, i32
  }
  func.func @transform_2(%arg0: i32, %arg1: i32) -> (i32, i32) {
    %c0_i32 = arith.constant 0 : i32
    %c0_i32_0 = arith.constant 0 : i32
    %c0_i32_1 = arith.constant 0 : i32
    return %c0_i32, %c0_i32_0 : i32, i32
  }
  func.func @transform_3(%arg0: i32, %arg1: i32) -> (i32, i32, i32) {
    %c0_i32 = arith.constant 0 : i32
    %c0_i32_0 = arith.constant 0 : i32
    %c0_i32_1 = arith.constant 0 : i32
    return %arg0, %c0_i32, %c0_i32_0 : i32, i32, i32
  }
  func.func @transform_4(%arg0: i32, %arg1: i32) -> (i32, i32, i32) {
    %c0_i32 = arith.constant 0 : i32
    %c0_i32_0 = arith.constant 0 : i32
    %c0_i32_1 = arith.constant 0 : i32
    return %arg0, %c0_i32, %c0_i32_0 : i32, i32, i32
  }
}

</mosaic_0001>

<llo_original>
// kernel: tpu_custom_call.1
$region0: #{tpu_custom_call.1}
  #allocation0 [shape = 'u32[]', space=smem, size = 0x4, offset = 0x4, fixed_abs, tag = 'smem constant byte address 0x4 - core index']
  #allocation1 [shape = 'u32[72,128]{1,0:T(1,128)}', space=vmem, size = 0x9000, scoped, tag = 'internal scratch']
  #allocation2 [shape = 'f32[8,128]{1,0:T(8,128)}', space=vmem, size = 0x1000, scoped, tag = 'scratch operand']
  #allocation3 [shape = 's32[8,128]{1,0:T(8,128)}', space=vmem, size = 0x1000, scoped, tag = 'scratch operand']
  #allocation4 [shape = 'f32[1]{0:T(128)S(6)}', space=smem, size = 0x200, scoped, tag = 'scoped memory for tpu_custom_call.1']
  %s0 = inlined_call_operand.<no memory space> [shape: f32[1], index: 0, kind: input, shape index: {}]
  %s1 = inlined_call_operand.hbm [shape: f32[8,256], index: 1, kind: input, shape index: {}]
  %s2 = inlined_call_operand.vmem [shape: f32[8,1], index: 2, kind: input, shape index: {}]
  %s3 = inlined_call_operand.hbm [shape: f32[1,1,128], index: 3, kind: output, shape index: {0}]
  %s4 = inlined_call_operand.hbm [shape: s32[1,1,128], index: 4, kind: output, shape index: {1}]
  %5 = xla_tuple %s3, %s4
  %s6 = sld [smem:[#allocation0]]
  $region42: #{tpu_custom_call.1} parent=0
    _
  %s8 = ssub.s32 1, %s6
  %s9 = scalar_select 0, %s8, %s6
  %10 = sst [smem:[#allocation4]] %s0
  $region1: #{tpu_custom_call.1} parent=0
    #allocation5 [shape = 'u8[8192]{0}', space=vmem, size = 0x2000, scoped, tag = 'input window, operand 1, single buffered']
    #allocation6 [shape = 's32[1]{0}', space=sflag, size = 0x4, scoped, tag = 'scoped memory for tpu_custom_call.1']
    #allocation7 [shape = 's32[1]{0}', space=sflag, size = 0x4, scoped, tag = 'scoped memory for tpu_custom_call.1']
    #allocation8 [shape = 'u8[512]{0}', space=vmem, size = 0x400, scoped, tag = 'output window, operand 0, single buffered']
    #allocation9 [shape = 'u8[512]{0}', space=vmem, size = 0x400, scoped, tag = 'output window, operand 1, single buffered']
    #allocation10 [shape = 's32[1]{0}', space=sflag, size = 0x4, scoped, tag = 'scoped memory for tpu_custom_call.1']
    %11 = vsyncpa [#allocation6], 0
    %12 = vsyncpa [#allocation7], 0
    %13 = vsyncpa [#allocation10], 0
    // Predicated region
    $region2: #{tpu_custom_call.1} parent=1 // pred_check
      _
    $region3: #{tpu_custom_call.1} parent=1 // pred_check_branch
      %15 = sbr.rel (0) target = $region5
    $region4: #{tpu_custom_call.1} parent=1 // pred_region
      _
    $region5: #{tpu_custom_call.1} parent=1 // pred_fallthru
      _
    // Predicated region
    $region6: #{tpu_custom_call.1} parent=1 // pred_check
      _
    $region7: #{tpu_custom_call.1} parent=1 // pred_check_branch
      %17 = sbr.rel (0) target = $region9
    $region8: #{tpu_custom_call.1} parent=1 // pred_region
      %s18 = sadd.s32 0, 0
      %p19 = scmp.lt.s32.totalorder %s18, 0
      %s20 = scalar_select %p19, %s18, 0
      %s21 = smul.u32 2, %s20
      %23 = vsyncadd [#allocation6], 0
      %s24 = smul.addr %s21, 8
      %s25 = scalar_lea.hbm %s1, %s24
      %s27 = sshll.u32 %s25, 4
      %s28 = int_to_ptr.hbm [resolvable:$true] %s27
      %s29 = sshll.u32 [#allocation5], 4
      %s30 = int_to_ptr.vmem [resolvable:$true] %s29
      %32 = dma.hbm_to_vmem [thread:$0]  %s28, 256, %s30, [#allocation6]
    $region9: #{tpu_custom_call.1} parent=1 // pred_fallthru
      _
    // Predicated region
    $region10: #{tpu_custom_call.1} parent=1 // pred_check
      _
    $region11: #{tpu_custom_call.1} parent=1 // pred_check_branch
      %34 = sbr.rel (0) target = $region13
    $region12: #{tpu_custom_call.1} parent=1 // pred_region
      _
    $region13: #{tpu_custom_call.1} parent=1 // pred_fallthru
      _
    // Predicated region
    $region14: #{tpu_custom_call.1} parent=1 // pred_check
      _
    $region15: #{tpu_custom_call.1} parent=1 // pred_check_branch
      %36 = sbr.rel (0) target = $region17
    $region16: #{tpu_custom_call.1} parent=1 // pred_region
      %38 = dma.done [#allocation6], 256
    $region17: #{tpu_custom_call.1} parent=1 // pred_fallthru
      _
    %s39 = sadd.s32 0, 0
    %p40 = scmp.lt.s32.totalorder %s39, 0
    %s41 = scalar_select %p40, %s39, 0
    %s42 = smul.u32 2, %s41
    %p43 = scmp.eq.s32.totalorder 0, 0
    // Predicated region
    $region18: #{tpu_custom_call.1} parent=1 // pred_check
      %p44 = pneg %p43
    $region19: #{tpu_custom_call.1} parent=1 // pred_check_branch
      %46 = sbr.rel (%p44) target = $region21
    $region20: #{tpu_custom_call.1} parent=1 // pred_region
      %47 = vst [vmem:[#allocation2] sm:$0xff] 0.0
      %48 = vst [vmem:[#allocation3] sm:$0xff] 0
    $region21: #{tpu_custom_call.1} parent=1 // pred_fallthru
      _
    %s49 = sld [smem:[#allocation4]]
    %v50 = vld [vmem:[#allocation5] sm:$0xff]
    %v51 = vld [vmem:[#allocation5 + $0x8] sm:$0xff]
    %s52 = sadd.s32 0, 0
    %s53 = smul.u32 %s52, 256
    %v54 = vlaneseq
    %v55 = vand.u32 %v54, 127
    %v56 = vadd.s32 %v55, 128
    %v57 = vstv %s53
    %v58 = vadd.s32 %v57, %v55
    %v59 = vadd.s32 %v57, %v56
    %vm60 = vcmp.lt.s32.totalorder %v58, 256
    %vm61 = vcmp.lt.s32.totalorder %v59, 256
    %vm62 = vcmp.ne.f32.partialorder %v50, %v50
    %vm63 = vcmp.ne.f32.partialorder %v51, %v51
    %vm64 = vmxor %vm62, 1
    %vm65 = vmxor %vm63, 1
    %vm66 = vmand %vm60, %vm64
    %vm67 = vmand %vm61, %vm65
    %v68 = vmul.f32 %v50, %v50
    %v69 = vmul.f32 %v51, %v51
    %v70 = vstv %s49
    %v71 = vadd.f32 %v70, %v68
    %v72 = vadd.f32 %v70, %v69
    %v73 = vrsqrt.pop %v71
    %v74 = vmul.f32 %v73, %v71
    %v75 = vmul.f32 %v74, %v73
    %v76 = vmul.f32 0.5, %v75
    %v77 = vsub.f32 1.5, %v76
    %v78 = vmul.f32 %v73, %v77
    %v79 = vmul.f32 %v71, %v78
    %vm80 = vcmp.eq.f32.partialorder %v71, inf
    %v81 = vsel %vm80, %v71, %v79
    %vm82 = vcmp.eq.f32.partialorder %v71, 0.0
    %v83 = vand.u32 %v71, 2147483648
    %v84 = vsel %vm82, %v83, %v81
    %v85 = vrsqrt.pop %v72
    %v86 = vmul.f32 %v85, %v72
    %v87 = vmul.f32 %v86, %v85
    %v88 = vmul.f32 0.5, %v87
    %v89 = vsub.f32 1.5, %v88
    %v90 = vmul.f32 %v85, %v89
    %v91 = vmul.f32 %v72, %v90
    %vm92 = vcmp.eq.f32.partialorder %v72, inf
    %v93 = vsel %vm92, %v72, %v91
    %vm94 = vcmp.eq.f32.partialorder %v72, 0.0
    %v95 = vand.u32 %v72, 2147483648
    %v96 = vsel %vm94, %v95, %v93
    %v97 = vsel %vm66, %v84, 0.0
    %v98 = vsel %vm67, %v96, 0.0
    %v99 = vsel %vm66, 1, 0
    %v100 = vsel %vm67, 1, 0
    %v101 = vld [vmem:[#allocation2] sm:$0xff]
    %v102 = vld [vmem:[#allocation3] sm:$0xff]
    %v103 = vadd.f32 %v101, %v97
    %v104 = vadd.s32 %v102, %v99
    %v105 = vadd.f32 %v103, %v98
    %v106 = vadd.s32 %v104, %v100
    %107 = vst [vmem:[#allocation2] sm:$0xff] %v105
    %108 = vst [vmem:[#allocation3] sm:$0xff] %v106
    // Predicated region
    $region22: #{tpu_custom_call.1} parent=1 // pred_check
      %p109 = pneg %p43
    $region23: #{tpu_custom_call.1} parent=1 // pred_check_branch
      %111 = sbr.rel (%p109) target = $region25
    $region24: #{tpu_custom_call.1} parent=1 // pred_region
      %v112 = vld [vmem:[#allocation2] sm:$0xff]
      %v113 = vld [vmem:[%s2] sm:$0xff]
      %115 = vset.pattern.permute.xlu0 0
      %116 = vperm.xlu0 %115, %v113
      %v117 = vpop.permute.xlu0 %116
      %v119 = vmul.f32 %v112, %v117
      %120 = vadd.xlane.f32.xlu0 %v119
      %v121 = vpop.xlane.xlu0 %120
      %v122 = vrot.slane %v121, 4
      %v123 = vadd.f32 %v121, %v122
      %v124 = vrot.slane %v123, 2
      %v125 = vadd.f32 %v123, %v124
      %v126 = vrot.slane %v125, 1
      %v127 = vadd.f32 %v125, %v126
      %s128 = vtos %v127
      %v129 = vld [vmem:[#allocation3] sm:$0xff]
      %v130 = vand.u32 %v129, 65535
      %v131 = vshrl.u32 %v129, 16
      %v132 = vcvt.s32.f32 %v130
      %v133 = vcvt.s32.f32 %v131
      %134 = vadd.xlane.f32.xlu0 %v132
      %v135 = vpop.xlane.xlu0 %134
      %136 = vadd.xlane.f32.xlu0 %v133
      %v137 = vpop.xlane.xlu0 %136
      %v138 = vcvt.f32.s32 %v135
      %v139 = vcvt.f32.s32 %v137
      %v140 = vshll.u32 %v139, 16
      %v141 = vadd.s32 %v140, %v138
      %v142 = vrot.slane %v141, 4
      %v143 = vadd.s32 %v141, %v142
      %v144 = vrot.slane %v143, 2
      %v145 = vadd.s32 %v143, %v144
      %v146 = vrot.slane %v145, 1
      %v147 = vadd.s32 %v145, %v146
      %s148 = vtos %v147
      %v149 = vstv %s128
      %150 = vst [vmem:[#allocation8] sm:$0x1] %v149
      %v151 = vstv %s148
      %152 = vst [vmem:[#allocation9] sm:$0x1] %v151
    $region25: #{tpu_custom_call.1} parent=1 // pred_fallthru
      _
    // Predicated region
    $region26: #{tpu_custom_call.1} parent=1 // pred_check
      _
    $region27: #{tpu_custom_call.1} parent=1 // pred_check_branch
      %154 = sbr.rel (0) target = $region29
    $region28: #{tpu_custom_call.1} parent=1 // pred_region
      %156 = vsyncadd [#allocation7], 0
      %s158 = sshll.u32 [#allocation8], 4
      %s159 = int_to_ptr.vmem [resolvable:$true] %s158
      %s160 = sshll.u32 %s3, 4
      %s161 = int_to_ptr.hbm [resolvable:$true] %s160
      %163 = dma.vmem_to_hbm [thread:$0]  %s159, 16, %s161, [#allocation7]
    $region29: #{tpu_custom_call.1} parent=1 // pred_fallthru
      _
    // Predicated region
    $region30: #{tpu_custom_call.1} parent=1 // pred_check
      _
    $region31: #{tpu_custom_call.1} parent=1 // pred_check_branch
      %165 = sbr.rel (0) target = $region33
    $region32: #{tpu_custom_call.1} parent=1 // pred_region
      %167 = vsyncadd [#allocation10], 0
      %s169 = sshll.u32 [#allocation9], 4
      %s170 = int_to_ptr.vmem [resolvable:$true] %s169
      %s171 = sshll.u32 %s4, 4
      %s172 = int_to_ptr.hbm [resolvable:$true] %s171
      %174 = dma.vmem_to_hbm [thread:$0]  %s170, 16, %s172, [#allocation10]
    $region33: #{tpu_custom_call.1} parent=1 // pred_fallthru
      _
    // Predicated region
    $region34: #{tpu_custom_call.1} parent=1 // pred_check
      _
    $region35: #{tpu_custom_call.1} parent=1 // pred_check_branch
      %176 = sbr.rel (0) target = $region37
    $region36: #{tpu_custom_call.1} parent=1 // pred_region
      %178 = dma.done [#allocation7], 16
    $region37: #{tpu_custom_call.1} parent=1 // pred_fallthru
      _
    // Predicated region
    $region38: #{tpu_custom_call.1} parent=1 // pred_check
      _
    $region39: #{tpu_custom_call.1} parent=1 // pred_check_branch
      %180 = sbr.rel (0) target = $region41
    $region40: #{tpu_custom_call.1} parent=1 // pred_region
      %182 = dma.done [#allocation10], 16
    $region41: #{tpu_custom_call.1} parent=1 // pred_fallthru
      _
    %183 = vsyncpa [#allocation6], 1
    %184 = vsyncpa [#allocation7], 1
    %185 = vsyncpa [#allocation10], 1

</llo_original>
